<compile_context>
chip_gen: v7x
topology: tpu7x:2x2x1
jax: 0.10.0
libtpu: 0.0.40
codegen_flags: <defaults>
</compile_context>

<pallas_src>
import functools

import jax
import jax.numpy as jnp
import numpy as np
from jax import lax
from jax.experimental import pallas as pl
from jax.experimental.pallas import tpu as pltpu

_LANES = 128
_GROUP_SUBLANES = 32                       # native tile for f32/bf16/int8 alike
_GROUP_ELEMS = _GROUP_SUBLANES * _LANES    # 4096 elements per group
_TARGET_TILE_BYTES = 8 * 1024 * 1024       # x-tile + y-tile bytes per grid step
_VMEM_LIMIT = 32 * 1024 * 1024             # safe on v5e/v6e (128 MiB) and v7x (64 MiB)
_UNROLL = 4


def _tensorcores_per_device() -> int:
    """Length of the leading 'parallel' grid axis.

    Returns 1 on single-TensorCore devices (v5e / v6e), 2 only if the runtime
    reports a multi-core device.  Correctness does not depend on this value
    (clamped duplicate blocks are masked to zero in-kernel)."""
    try:
        dev = jax.devices()[0]
        if dev.platform != "tpu":
            return 1
        n = getattr(dev, "num_cores", None)
        if isinstance(n, int) and n > 0:
            return min(int(n), 2)
    except Exception:
        pass
    return 1


def _dice_kernel(x_ref, y_ref, out_ref, acc_i_ref, acc_u_ref, *,
                 tile_groups, total_blocks, mask_from, n_valid, unroll):
    """Grid = (cores, steps).  Accumulates per-core partial dice sums.

    x_ref/y_ref : (tile_groups, 32, 128) input tiles (native dtypes).
    out_ref     : (1, 2) SMEM -> [intersection_sum, union_sum] for this core.
    acc_*_ref   : (32, 128) f32 VMEM accumulators (persist across steps).
    """
    c = pl.program_id(0)
    j = pl.program_id(1)
    steps = pl.num_programs(1)
    b = c * steps + j                     # logical (un-clamped) block id

    @pl.when(j == 0)
    def _init():
        acc_i_ref[...] = jnp.zeros_like(acc_i_ref)
        acc_u_ref[...] = jnp.zeros_like(acc_u_ref)

    def accumulate(masked):
        if masked:
            n_full_rows = n_valid // _LANES
            rem = n_valid % _LANES
            # Cheap mask: (32,1) sublane iota; lane iota only if there is a
            # ragged boundary row.  Hoisted out of the group loop.
            s_ids = lax.broadcasted_iota(jnp.int32, (_GROUP_SUBLANES, 1), 0)
            if rem:
                l_ids = lax.broadcasted_iota(jnp.int32, (1, _LANES), 1)
            row0 = b * (tile_groups * _GROUP_SUBLANES)

        def body(g, carry):
            ai, au = carry
            xg = x_ref[g].astype(jnp.float32)
            yg = y_ref[g].astype(jnp.float32)
            # sigmoid(x) = 0.5*tanh(0.5*x) + 0.5 -> transcendental on the EUP.
            sx = 0.5 * jnp.tanh(0.5 * xg) + 0.5
            if masked:
                rows = row0 + g * _GROUP_SUBLANES + s_ids          # (32, 1)
                valid = rows < n_full_rows
                if rem:
                    valid = valid | ((rows == n_full_rows) & (l_ids < rem))
                sx = jnp.where(valid, sx, 0.0)
                yg = jnp.where(valid, yg, 0.0)
            return ai + sx * yg, au + (sx + yg)

        zeros = jnp.zeros((_GROUP_SUBLANES, _LANES), jnp.float32)
        ai, au = lax.fori_loop(0, tile_groups, body, (zeros, zeros),
                               unroll=unroll)
        acc_i_ref[...] += ai
        acc_u_ref[...] += au

    if mask_from >= total_blocks:
        # Fully aligned, no duplicate blocks: lean path everywhere.
        accumulate(masked=False)
    elif mask_from <= 0:
        # Tiny input: every block is a boundary block.
        accumulate(masked=True)
    else:
        # Only the boundary block and clamped duplicate blocks pay for masking.
        @pl.when(b < mask_from)
        def _lean():
            accumulate(masked=False)

        @pl.when(b >= mask_from)
        def _masked():
            accumulate(masked=True)

    # One-time epilogue: XLU cross-lane reduce + scalar SMEM store.
    @pl.when(j == steps - 1)
    def _finalize():
        out_ref[0, 0] = jnp.sum(acc_i_ref[...])
        out_ref[0, 1] = jnp.sum(acc_u_ref[...])


@jax.jit
def _dice_sums(logits, target):
    """Returns (sum(sigmoid(logits)*target), sum(sigmoid(logits))+sum(target))."""
    x = logits.reshape(-1)
    y = target.reshape(-1)
    # Keep HBM traffic narrow: no wrapper upcast to f32.  Bool/int targets go
    # to bf16 (exact for 0/1 labels); float inputs stream in native dtype.
    if not jnp.issubdtype(x.dtype, jnp.floating):
        x = x.astype(jnp.float32)
    if not jnp.issubdtype(y.dtype, jnp.floating):
        y = y.astype(jnp.bfloat16)
    n = x.shape[0]
    if n == 0:
        return jnp.zeros((), jnp.float32), jnp.zeros((), jnp.float32)

    # Only the rare ragged case pays for a padding copy; padded (or garbage)
    # elements are masked out in-kernel.
    n_pad = -(-n // _GROUP_ELEMS) * _GROUP_ELEMS
    if n_pad != n:
        x = jnp.pad(x, (0, n_pad - n))
        y = jnp.pad(y, (0, n_pad - n))
    groups = n_pad // _GROUP_ELEMS
    x3 = x.reshape(groups, _GROUP_SUBLANES, _LANES)
    y3 = y.reshape(groups, _GROUP_SUBLANES, _LANES)

    bytes_per_group = _GROUP_ELEMS * (x3.dtype.itemsize + y3.dtype.itemsize)
    tile_groups = max(1, min(groups, _TARGET_TILE_BYTES // bytes_per_group))
    nblocks = -(-groups // tile_groups)           # ceil(groups / tile_groups)
    ncores = _tensorcores_per_device()
    steps = -(-nblocks // ncores)                 # blocks per core
    total_blocks = ncores * steps

    # Blocks with logical id >= mask_from need in-kernel masking: the boundary
    # block (if it extends past n) plus any clamped duplicate blocks.
    last_block_exact = (n == n_pad) and (groups % tile_groups == 0)
    mask_from = nblocks if last_block_exact else nblocks - 1

    def block_map(c, j):
        # Clamp so tail steps never index past the array; their contribution
        # is masked to zero in-kernel (and the repeated block index lets the
        # pipeline skip the redundant DMA).
        b = c * steps + j
        return (jnp.minimum(b, nblocks - 1), 0, 0)

    kernel = functools.partial(
        _dice_kernel,
        tile_groups=tile_groups,
        total_blocks=total_blocks,
        mask_from=mask_from,
        n_valid=n,
        unroll=min(_UNROLL, tile_groups),
    )

    bytes_accessed = (x3.size * x3.dtype.itemsize
                      + y3.size * y3.dtype.itemsize + ncores * 2 * 4)
    cost = pl.CostEstimate(flops=8 * n, transcendentals=n,
                           bytes_accessed=bytes_accessed)

    out = pl.pallas_call(
        kernel,
        out_shape=jax.ShapeDtypeStruct((ncores, 2), jnp.float32),
        grid_spec=pltpu.PrefetchScalarGridSpec(
            num_scalar_prefetch=0,
            grid=(ncores, steps),
            in_specs=[
                pl.BlockSpec((tile_groups, _GROUP_SUBLANES, _LANES), block_map),
                pl.BlockSpec((tile_groups, _GROUP_SUBLANES, _LANES), block_map),
            ],
            out_specs=pl.BlockSpec(
                (1, 2), lambda c, j: (c, 0),
                memory_space=pltpu.MemorySpace.SMEM),
            scratch_shapes=[
                pltpu.VMEM((_GROUP_SUBLANES, _LANES), jnp.float32),
                pltpu.VMEM((_GROUP_SUBLANES, _LANES), jnp.float32),
            ],
        ),
        compiler_params=pltpu.CompilerParams(
            dimension_semantics=("parallel", "arbitrary"),
            vmem_limit_bytes=_VMEM_LIMIT,
        ),
        cost_estimate=cost,
    )(x3, y3)

    # Combine the per-core partials.
    return out[:, 0].sum(), out[:, 1].sum()


class GlobalDiceLossWithLogitsForPPE:
    """JAX/Pallas port of the PyTorch module (same stateful accumulation)."""

    def __init__(self, report_name: str):
        self.report_name = report_name
        self.intersection = jnp.zeros((), jnp.float32)
        self.union = jnp.zeros((), jnp.float32)
        self.last_report = None

    def forward(self, batch, model_output, is_last_batch: bool):
        inter, union = _dice_sums(model_output, batch["target"])
        # Keep running sums device-resident; host sync only on the last batch.
        self.intersection = self.intersection + inter
        self.union = self.union + union
        if is_last_batch:
            inter_h = float(jax.device_get(self.intersection))
            union_h = float(jax.device_get(self.union))
            final_metric = 1.0 - 2.0 * inter_h / max(union_h, 1e-07)
            # TODO(synk): ppe.reporting.report has no JAX equivalent; store it.
            self.last_report = {self.report_name: final_metric}
            self.intersection = jnp.zeros((), jnp.float32)
            self.union = jnp.zeros((), jnp.float32)
            return final_metric
        return None

    __call__ = forward


if __name__ == "__main__":
    def ref_metric(pairs):
        ri, ru = 0.0, 0.0
        for lg, tg in pairs:
            sx = jax.nn.sigmoid(lg.astype(jnp.float32))
            tgf = tg.astype(jnp.float32)
            ri += float(jnp.sum(sx * tgf))
            ru += float(jnp.sum(sx) + jnp.sum(tgf))
        return 1.0 - 2.0 * ri / max(ru, 1e-07)

    key = jax.random.PRNGKey(0)
    k1, k2, k3, k4, k5, k6, k7, k8 = jax.random.split(key, 8)

    # --- 1) Small NCHW example: two batches, stateful accumulation. ---
    logits_a = jax.random.normal(k1, (2, 4, 16, 16), jnp.float32)
    target_a = (jax.random.uniform(k2, (2, 4, 16, 16)) > 0.5).astype(jnp.float32)
    logits_b = jax.random.normal(k3, (2, 4, 16, 16), jnp.float32)
    target_b = (jax.random.uniform(k4, (2, 4, 16, 16)) > 0.5).astype(jnp.float32)

    m = GlobalDiceLossWithLogitsForPPE("val/dice")
    m({"target": target_a}, logits_a, is_last_batch=False)
    final = m({"target": target_b}, logits_b, is_last_batch=True)
    final = float(jax.block_until_ready(jnp.asarray(final)))
    np.testing.assert_allclose(
        final, ref_metric([(logits_a, target_a), (logits_b, target_b)]),
        rtol=1e-5, atol=1e-5)

    # --- 2) Ragged element count + bool target: mask path, narrow dtype. ---
    logits_c = jax.random.normal(k5, (3, 5, 7, 2), jnp.float32)
    target_c = jax.random.uniform(k6, (3, 5, 7, 2)) > 0.5        # bool target
    m2 = GlobalDiceLossWithLogitsForPPE("val/dice_ragged")
    final2 = float(jax.block_until_ready(
        jnp.asarray(m2({"target": target_c}, logits_c, is_last_batch=True))))
    np.testing.assert_allclose(final2, ref_metric([(logits_c, target_c)]),
                               rtol=1e-5, atol=1e-5)

    # --- 3) Larger aligned input: multi-step grid, lean path only. ---
    logits_d = jax.random.normal(k7, (8, 16, 128, 128), jnp.float32)
    target_d = (jax.random.uniform(k8, (8, 16, 128, 128)) > 0.5).astype(jnp.float32)
    m3 = GlobalDiceLossWithLogitsForPPE("val/dice_big")
    final3 = float(jax.block_until_ready(
        jnp.asarray(m3({"target": target_d}, logits_d, is_last_batch=True))))
    np.testing.assert_allclose(final3, ref_metric([(logits_d, target_d)]),
                               rtol=1e-4, atol=1e-4)

    print("KERNEL_OK")
</pallas_src>

<mosaic_0001>
module attributes {stable_mosaic.version = 11 : i64} {
  func.func @_dice_kernel(%arg0: i32, %arg1: i32, %arg2: memref<1x32x128xf32, #tpu.memory_space<vmem>>, %arg3: memref<1x32x128xf32, #tpu.memory_space<vmem>>, %arg4: memref<1x2xf32, #tpu.memory_space<smem>>, %arg5: memref<32x128xf32, #tpu.memory_space<vmem>>, %arg6: memref<32x128xf32, #tpu.memory_space<vmem>>) attributes {dimension_semantics = [#tpu.dimension_semantics<parallel>, #tpu.dimension_semantics<arbitrary>], iteration_bounds = array<i64: 1, 1>, scalar_prefetch = 0 : i64, scratch_operands = 2 : i64, tpu.core_type = #tpu.core_type<tc>, window_params = [{transform_indices = @transform_0, window_bounds = array<i64: 1, 32, 128>}, {transform_indices = @transform_1, window_bounds = array<i64: 1, 32, 128>}, {transform_indices = @transform_2, window_bounds = array<i64: 1, 2>}]} {
    %c1_i32 = arith.constant 1 : i32
    %0 = arith.muli %arg0, %c1_i32 : i32
    %1 = arith.addi %0, %arg1 : i32
    %c0_i32 = arith.constant 0 : i32
    %2 = arith.cmpi eq, %arg1, %c0_i32 : i32
    %3 = arith.extui %2 : i1 to i32
    %c0_i32_0 = arith.constant 0 : i32
    %4 = arith.cmpi ne, %3, %c0_i32_0 : i32
    scf.if %4 {
      %cst_22 = arith.constant 0.000000e+00 : f32
      %48 = vector.broadcast %cst_22 : f32 to vector<32x128xf32>
      %c0_23 = arith.constant 0 : index
      %c0_24 = arith.constant 0 : index
      %49 = vector.load %arg5[%c0_23, %c0_24] : memref<32x128xf32, #tpu.memory_space<vmem>>, vector<32x128xf32>
      tpu.vector_store %arg5[%c0_23, %c0_24], %48 {strides = array<i32>} : memref<32x128xf32, #tpu.memory_space<vmem>>, vector<32x128xf32>,
      %cst_25 = arith.constant 0.000000e+00 : f32
      %50 = vector.broadcast %cst_25 : f32 to vector<32x128xf32>
      %c0_26 = arith.constant 0 : index
      %c0_27 = arith.constant 0 : index
      %51 = vector.load %arg6[%c0_26, %c0_27] : memref<32x128xf32, #tpu.memory_space<vmem>>, vector<32x128xf32>
      tpu.vector_store %arg6[%c0_26, %c0_27], %50 {strides = array<i32>} : memref<32x128xf32, #tpu.memory_space<vmem>>, vector<32x128xf32>,
    } else {
    }
    %5 = tpu.iota {dimensions = array<i32: 0>} : vector<32x1xi32>
    %c32_i32 = arith.constant 32 : i32
    %6 = arith.muli %1, %c32_i32 : i32
    %cst = arith.constant 0.000000e+00 : f32
    %7 = vector.broadcast %cst : f32 to vector<32x128xf32>
    %c0_i32_1 = arith.constant 0 : i32
    %8 = arith.index_cast %c0_i32_1 : i32 to index
    %c0 = arith.constant 0 : index
    %c0_2 = arith.constant 0 : index
    %9 = vector.load %arg2[%8, %c0, %c0_2] : memref<1x32x128xf32, #tpu.memory_space<vmem>>, vector<1x32x128xf32>
    %10 = vector.shape_cast %9 : vector<1x32x128xf32> to vector<32x128xf32>
    %11 = arith.index_cast %c0_i32_1 : i32 to index
    %c0_3 = arith.constant 0 : index
    %c0_4 = arith.constant 0 : index
    %12 = vector.load %arg3[%11, %c0_3, %c0_4] : memref<1x32x128xf32, #tpu.memory_space<vmem>>, vector<1x32x128xf32>
    %13 = vector.shape_cast %12 : vector<1x32x128xf32> to vector<32x128xf32>
    %cst_5 = arith.constant 5.000000e-01 : f32
    %14 = vector.broadcast %cst_5 : f32 to vector<32x128xf32>
    %15 = arith.mulf %14, %10 : vector<32x128xf32>
    %16 = math.tanh %15 : vector<32x128xf32>
    %cst_6 = arith.constant 5.000000e-01 : f32
    %17 = vector.broadcast %cst_6 : f32 to vector<32x128xf32>
    %18 = arith.mulf %17, %16 : vector<32x128xf32>
    %cst_7 = arith.constant 5.000000e-01 : f32
    %19 = vector.broadcast %cst_7 : f32 to vector<32x128xf32>
    %20 = arith.addf %18, %19 : vector<32x128xf32>
    %c32_i32_8 = arith.constant 32 : i32
    %21 = arith.muli %c0_i32_1, %c32_i32_8 : i32
    %22 = arith.addi %6, %21 : i32
    %23 = vector.broadcast %22 : i32 to vector<32x1xi32>
    %24 = arith.addi %23, %5 : vector<32x1xi32>
    %c16_i32 = arith.constant 16 : i32
    %25 = vector.broadcast %c16_i32 : i32 to vector<32x1xi32>
    %26 = arith.cmpi slt, %24, %25 : vector<32x1xi32>
    %cst_9 = arith.constant 0.000000e+00 : f32
    %27 = vector.shape_cast %26 : vector<32x1xi1> to vector<32x1xi1>
    %28 = vector.broadcast %27 : vector<32x1xi1> to vector<32x128xi1>
    %29 = vector.broadcast %cst_9 : f32 to vector<32x128xf32>
    %30 = arith.select %28, %20, %29 : vector<32x128xi1>, vector<32x128xf32>
    %cst_10 = arith.constant 0.000000e+00 : f32
    %31 = vector.shape_cast %26 : vector<32x1xi1> to vector<32x1xi1>
    %32 = vector.broadcast %31 : vector<32x1xi1> to vector<32x128xi1>
    %33 = vector.broadcast %cst_10 : f32 to vector<32x128xf32>
    %34 = arith.select %32, %13, %33 : vector<32x128xi1>, vector<32x128xf32>
    %35 = arith.mulf %30, %34 : vector<32x128xf32>
    %36 = arith.addf %7, %35 : vector<32x128xf32>
    %37 = arith.addf %30, %34 : vector<32x128xf32>
    %38 = arith.addf %7, %37 : vector<32x128xf32>
    %c1_i32_11 = arith.constant 1 : i32
    %c0_12 = arith.constant 0 : index
    %c0_13 = arith.constant 0 : index
    %39 = vector.load %arg5[%c0_12, %c0_13] : memref<32x128xf32, #tpu.memory_space<vmem>>, vector<32x128xf32>
    %40 = arith.addf %39, %36 : vector<32x128xf32>
    %c0_14 = arith.constant 0 : index
    %c0_15 = arith.constant 0 : index
    %41 = vector.load %arg5[%c0_14, %c0_15] : memref<32x128xf32, #tpu.memory_space<vmem>>, vector<32x128xf32>
    tpu.vector_store %arg5[%c0_14, %c0_15], %40 {strides = array<i32>} : memref<32x128xf32, #tpu.memory_space<vmem>>, vector<32x128xf32>,
    %c0_16 = arith.constant 0 : index
    %c0_17 = arith.constant 0 : index
    %42 = vector.load %arg6[%c0_16, %c0_17] : memref<32x128xf32, #tpu.memory_space<vmem>>, vector<32x128xf32>
    %43 = arith.addf %42, %38 : vector<32x128xf32>
    %c0_18 = arith.constant 0 : index
    %c0_19 = arith.constant 0 : index
    %44 = vector.load %arg6[%c0_18, %c0_19] : memref<32x128xf32, #tpu.memory_space<vmem>>, vector<32x128xf32>
    tpu.vector_store %arg6[%c0_18, %c0_19], %43 {strides = array<i32>} : memref<32x128xf32, #tpu.memory_space<vmem>>, vector<32x128xf32>,
    %c0_i32_20 = arith.constant 0 : i32
    %45 = arith.cmpi eq, %arg1, %c0_i32_20 : i32
    %46 = arith.extui %45 : i1 to i32
    %c0_i32_21 = arith.constant 0 : i32
    %47 = arith.cmpi ne, %46, %c0_i32_21 : i32
    scf.if %47 {
      %c0_22 = arith.constant 0 : index
      %c0_23 = arith.constant 0 : index
      %48 = vector.load %arg5[%c0_22, %c0_23] : memref<32x128xf32, #tpu.memory_space<vmem>>, vector<32x128xf32>
      %49 = vector.shape_cast %48 : vector<32x128xf32> to vector<1x32x128xf32>
      %cst_24 = arith.constant dense<0.000000e+00> : vector<1xf32>
      %50 = vector.multi_reduction <add>, %49, %cst_24 [1, 2] : vector<1x32x128xf32> to vector<1xf32>
      %51 = vector.shape_cast %50 : vector<1xf32> to vector<1x1x1xf32>
      %52 = vector.extract %51[0, 0, 0] : f32 from vector<1x1x1xf32>
      %c0_25 = arith.constant 0 : index
      %c0_26 = arith.constant 0 : index
      %53 = memref.load %arg4[%c0_25, %c0_26] : memref<1x2xf32, #tpu.memory_space<smem>>
      memref.store %52, %arg4[%c0_25, %c0_26] : memref<1x2xf32, #tpu.memory_space<smem>>
      %c0_27 = arith.constant 0 : index
      %c0_28 = arith.constant 0 : index
      %54 = vector.load %arg6[%c0_27, %c0_28] : memref<32x128xf32, #tpu.memory_space<vmem>>, vector<32x128xf32>
      %55 = vector.shape_cast %54 : vector<32x128xf32> to vector<1x32x128xf32>
      %cst_29 = arith.constant dense<0.000000e+00> : vector<1xf32>
      %56 = vector.multi_reduction <add>, %55, %cst_29 [1, 2] : vector<1x32x128xf32> to vector<1xf32>
      %57 = vector.shape_cast %56 : vector<1xf32> to vector<1x1x1xf32>
      %58 = vector.extract %57[0, 0, 0] : f32 from vector<1x1x1xf32>
      %c0_30 = arith.constant 0 : index
      %c1 = arith.constant 1 : index
      %59 = memref.load %arg4[%c0_30, %c1] : memref<1x2xf32, #tpu.memory_space<smem>>
      memref.store %58, %arg4[%c0_30, %c1] : memref<1x2xf32, #tpu.memory_space<smem>>
    } else {
    }
    return
  }
  func.func @transform_0(%arg0: i32, %arg1: i32) -> (i32, i32, i32) {
    %c1_i32 = arith.constant 1 : i32
    %0 = arith.muli %arg0, %c1_i32 : i32
    %1 = arith.addi %0, %arg1 : i32
    %c0_i32 = arith.constant 0 : i32
    %2 = arith.minsi %1, %c0_i32 : i32
    %c0_i32_0 = arith.constant 0 : i32
    %c0_i32_1 = arith.constant 0 : i32
    %c0_i32_2 = arith.constant 0 : i32
    return %2, %c0_i32_0, %c0_i32_1 : i32, i32, i32
  }
  func.func @transform_1(%arg0: i32, %arg1: i32) -> (i32, i32, i32) {
    %c1_i32 = arith.constant 1 : i32
    %0 = arith.muli %arg0, %c1_i32 : i32
    %1 = arith.addi %0, %arg1 : i32
    %c0_i32 = arith.constant 0 : i32
    %2 = arith.minsi %1, %c0_i32 : i32
    %c0_i32_0 = arith.constant 0 : i32
    %c0_i32_1 = arith.constant 0 : i32
    %c0_i32_2 = arith.constant 0 : i32
    return %2, %c0_i32_0, %c0_i32_1 : i32, i32, i32
  }
  func.func @transform_2(%arg0: i32, %arg1: i32) -> (i32, i32) {
    %c0_i32 = arith.constant 0 : i32
    %c0_i32_0 = arith.constant 0 : i32
    return %arg0, %c0_i32 : i32, i32
  }
}

</mosaic_0001>

<llo_original>
// kernel: _dice_sums.1
$region0: #{_dice_sums.1}
  #allocation0 [shape = 'u32[]', space=smem, size = 0x4, offset = 0x4, fixed_abs, tag = 'smem constant byte address 0x4 - core index']
  #allocation1 [shape = 'u32[144,128]{1,0:T(1,128)}', space=vmem, size = 0x12000, scoped, tag = 'internal scratch']
  #allocation2 [shape = 'f32[32,128]{1,0:T(8,128)}', space=vmem, size = 0x4000, scoped, tag = 'scratch operand']
  #allocation3 [shape = 'f32[32,128]{1,0:T(8,128)}', space=vmem, size = 0x4000, scoped, tag = 'scratch operand']
  %s0 = inlined_call_operand.vmem [shape: f32[1,32,128], index: 0, kind: input, shape index: {}]
  %s1 = inlined_call_operand.vmem [shape: f32[1,32,128], index: 1, kind: input, shape index: {}]
  %s2 = inlined_call_operand.vmem [shape: f32[1,2], index: 2, kind: output, shape index: {}]
  %s3 = sld [smem:[#allocation0]]
  $region26: #{_dice_sums.1} parent=0
    _
  %s5 = ssub.s32 1, %s3
  %s6 = scalar_select 0, %s5, %s3
  $region1: #{_dice_sums.1} parent=0
    #allocation4 [shape = 'u8[512]{0}', space=smem, size = 0x200, scoped, tag = 'output window, operand 0, single buffered']
    #allocation5 [shape = 's32[1]{0}', space=sflag, size = 0x4, scoped, tag = 'scoped memory for _dice_sums.1']
    %7 = vsyncpa [#allocation5], 0
    // Predicated region
    $region2: #{_dice_sums.1} parent=1 // pred_check
      _
    $region3: #{_dice_sums.1} parent=1 // pred_check_branch
      %9 = sbr.rel (0) target = $region5
    $region4: #{_dice_sums.1} parent=1 // pred_region
      %s10 = sadd.s32 0, 0
      %p11 = scmp.lt.s32.totalorder %s10, 0
      %s12 = scalar_select %p11, %s10, 0
      %p13 = scmp.lt.s32.totalorder %s12, 0
      %s14 = scalar_select %p13, %s12, 0
      %s15 = smul.addr %s14, 4
      %s16 = smul.addr %s15, 8
      %s17 = scalar_lea.vmem %s0, %s16
      %s18 = sadd.s32 0, 0
      %p19 = scmp.lt.s32.totalorder %s18, 0
      %s20 = scalar_select %p19, %s18, 0
    $region5: #{_dice_sums.1} parent=1 // pred_fallthru
      _
    // Predicated region
    $region6: #{_dice_sums.1} parent=1 // pred_check
      _
    $region7: #{_dice_sums.1} parent=1 // pred_check_branch
      %22 = sbr.rel (0) target = $region9
    $region8: #{_dice_sums.1} parent=1 // pred_region
      %s23 = sadd.s32 0, 0
      %p24 = scmp.lt.s32.totalorder %s23, 0
      %s25 = scalar_select %p24, %s23, 0
      %p26 = scmp.lt.s32.totalorder %s25, 0
      %s27 = scalar_select %p26, %s25, 0
      %s28 = smul.addr %s27, 4
      %s29 = smul.addr %s28, 8
      %s30 = scalar_lea.vmem %s1, %s29
      %s31 = sadd.s32 0, 0
      %p32 = scmp.lt.s32.totalorder %s31, 0
      %s33 = scalar_select %p32, %s31, 0
    $region9: #{_dice_sums.1} parent=1 // pred_fallthru
      _
    %s34 = sadd.s32 0, 0
    %p35 = scmp.lt.s32.totalorder %s34, 0
    %s36 = scalar_select %p35, %s34, 0
    %p37 = scmp.lt.s32.totalorder %s36, 0
    %s38 = scalar_select %p37, %s36, 0
    %s39 = smul.addr %s38, 4
    %s40 = smul.addr %s39, 8
    %s41 = scalar_lea.vmem %s0, %s40
    %s42 = sadd.s32 0, 0
    %p43 = scmp.lt.s32.totalorder %s42, 0
    %s44 = scalar_select %p43, %s42, 0
    %p45 = scmp.lt.s32.totalorder %s44, 0
    %s46 = scalar_select %p45, %s44, 0
    %s47 = smul.addr %s46, 4
    %s48 = smul.addr %s47, 8
    %s49 = scalar_lea.vmem %s1, %s48
    %s50 = sadd.s32 0, 0
    %p51 = scmp.lt.s32.totalorder %s50, 0
    %s52 = scalar_select %p51, %s50, 0
    %p53 = scmp.lt.s32.totalorder %s52, 0
    %s54 = scalar_select %p53, %s52, 0
    %s55 = smul.addr %s54, 4
    %s56 = smul.addr %s55, 8
    %s57 = scalar_lea.vmem %s0, %s56
    %s58 = sadd.s32 0, 0
    %p59 = scmp.lt.s32.totalorder %s58, 0
    %s60 = scalar_select %p59, %s58, 0
    %s61 = sadd.s32 0, 0
    %p62 = scmp.lt.s32.totalorder %s61, 0
    %s63 = scalar_select %p62, %s61, 0
    %p64 = scmp.lt.s32.totalorder %s63, 0
    %s65 = scalar_select %p64, %s63, 0
    %s66 = smul.addr %s65, 4
    %s67 = smul.addr %s66, 8
    %s68 = scalar_lea.vmem %s1, %s67
    %s69 = sadd.s32 0, 0
    %p70 = scmp.lt.s32.totalorder %s69, 0
    %s71 = scalar_select %p70, %s69, 0
    %s72 = sadd.s32 0, 0
    %p73 = scmp.eq.s32.totalorder 0, 0
    // Predicated region
    $region10: #{_dice_sums.1} parent=1 // pred_check
      %p74 = pneg %p73
    $region11: #{_dice_sums.1} parent=1 // pred_check_branch
      %76 = sbr.rel (%p74) target = $region13
    $region12: #{_dice_sums.1} parent=1 // pred_region
      %77 = vst [vmem:[#allocation2] sm:$0xff] 0.0
      %78 = vst [vmem:[#allocation2 + $0x8] sm:$0xff] 0.0
      %79 = vst [vmem:[#allocation2 + $0x10] sm:$0xff] 0.0
      %80 = vst [vmem:[#allocation2 + $0x18] sm:$0xff] 0.0
      %81 = vst [vmem:[#allocation3] sm:$0xff] 0.0
      %82 = vst [vmem:[#allocation3 + $0x8] sm:$0xff] 0.0
      %83 = vst [vmem:[#allocation3 + $0x10] sm:$0xff] 0.0
      %84 = vst [vmem:[#allocation3 + $0x18] sm:$0xff] 0.0
    $region13: #{_dice_sums.1} parent=1 // pred_fallthru
      _
    %v85 = vlaneseq
    %v86 = vshrl.u32 %v85, 7
    %v87 = vadd.s32 %v86, 8
    %v88 = vadd.s32 %v86, 16
    %v89 = vadd.s32 %v86, 24
    %s90 = smul.u32 %s72, 32
    %v91 = vld [vmem:[%s57] sm:$0xff]
    %v92 = vld [vmem:[%s57 + $0x8] sm:$0xff]
    %v93 = vld [vmem:[%s57 + $0x10] sm:$0xff]
    %v94 = vld [vmem:[%s57 + $0x18] sm:$0xff]
    %v95 = vld [vmem:[%s68] sm:$0xff]
    %v96 = vld [vmem:[%s68 + $0x8] sm:$0xff]
    %v97 = vld [vmem:[%s68 + $0x10] sm:$0xff]
    %v98 = vld [vmem:[%s68 + $0x18] sm:$0xff]
    %v99 = vmul.f32 %v91, 0.5
    %v100 = vmul.f32 %v92, 0.5
    %v101 = vmul.f32 %v93, 0.5
    %v102 = vmul.f32 %v94, 0.5
    %v103 = vtanh.pop %v99
    %v104 = vtanh.pop %v100
    %v105 = vtanh.pop %v101
    %v106 = vtanh.pop %v102
    %v107 = vmul.f32 %v103, 0.5
    %v108 = vmul.f32 %v104, 0.5
    %v109 = vmul.f32 %v105, 0.5
    %v110 = vmul.f32 %v106, 0.5
    %v111 = vadd.f32 %v107, 0.5
    %v112 = vadd.f32 %v108, 0.5
    %v113 = vadd.f32 %v109, 0.5
    %v114 = vadd.f32 %v110, 0.5
    %v115 = vstv %s90
    %v116 = vadd.s32 %v115, %v86
    %v117 = vadd.s32 %v115, %v87
    %v118 = vadd.s32 %v115, %v88
    %v119 = vadd.s32 %v115, %v89
    %vm120 = vcmp.lt.s32.totalorder %v116, 16
    %vm121 = vcmp.lt.s32.totalorder %v117, 16
    %vm122 = vcmp.lt.s32.totalorder %v118, 16
    %vm123 = vcmp.lt.s32.totalorder %v119, 16
    %v124 = vsel %vm120, 1, 0
    %v125 = vsel %vm121, 1, 0
    %v126 = vsel %vm122, 1, 0
    %v127 = vsel %vm123, 1, 0
    %vm128 = vcmp.eq.s32.totalorder %v124, 1
    %vm129 = vcmp.eq.s32.totalorder %v125, 1
    %vm130 = vcmp.eq.s32.totalorder %v126, 1
    %vm131 = vcmp.eq.s32.totalorder %v127, 1
    %v132 = vsel %vm128, %v111, 0.0
    %v133 = vsel %vm129, %v112, 0.0
    %v134 = vsel %vm130, %v113, 0.0
    %v135 = vsel %vm131, %v114, 0.0
    %v136 = vsel %vm128, %v95, 0.0
    %v137 = vsel %vm129, %v96, 0.0
    %v138 = vsel %vm130, %v97, 0.0
    %v139 = vsel %vm131, %v98, 0.0
    %v140 = vmul.f32 %v132, %v136
    %v141 = vmul.f32 %v133, %v137
    %v142 = vmul.f32 %v134, %v138
    %v143 = vmul.f32 %v135, %v139
    %v144 = vadd.f32 %v140, 0.0
    %v145 = vadd.f32 %v141, 0.0
    %v146 = vadd.f32 %v142, 0.0
    %v147 = vadd.f32 %v143, 0.0
    %v148 = vadd.f32 %v132, %v136
    %v149 = vadd.f32 %v133, %v137
    %v150 = vadd.f32 %v134, %v138
    %v151 = vadd.f32 %v135, %v139
    %v152 = vadd.f32 %v148, 0.0
    %v153 = vadd.f32 %v149, 0.0
    %v154 = vadd.f32 %v150, 0.0
    %v155 = vadd.f32 %v151, 0.0
    %v156 = vld [vmem:[#allocation2] sm:$0xff]
    %v157 = vld [vmem:[#allocation2 + $0x8] sm:$0xff]
    %v158 = vld [vmem:[#allocation2 + $0x10] sm:$0xff]
    %v159 = vld [vmem:[#allocation2 + $0x18] sm:$0xff]
    %v160 = vadd.f32 %v156, %v144
    %v161 = vadd.f32 %v157, %v145
    %v162 = vadd.f32 %v158, %v146
    %v163 = vadd.f32 %v159, %v147
    %164 = vst [vmem:[#allocation2] sm:$0xff] %v160
    %165 = vst [vmem:[#allocation2 + $0x8] sm:$0xff] %v161
    %166 = vst [vmem:[#allocation2 + $0x10] sm:$0xff] %v162
    %167 = vst [vmem:[#allocation2 + $0x18] sm:$0xff] %v163
    %v168 = vld [vmem:[#allocation3] sm:$0xff]
    %v169 = vld [vmem:[#allocation3 + $0x8] sm:$0xff]
    %v170 = vld [vmem:[#allocation3 + $0x10] sm:$0xff]
    %v171 = vld [vmem:[#allocation3 + $0x18] sm:$0xff]
    %v172 = vadd.f32 %v168, %v152
    %v173 = vadd.f32 %v169, %v153
    %v174 = vadd.f32 %v170, %v154
    %v175 = vadd.f32 %v171, %v155
    %176 = vst [vmem:[#allocation3] sm:$0xff] %v172
    %177 = vst [vmem:[#allocation3 + $0x8] sm:$0xff] %v173
    %178 = vst [vmem:[#allocation3 + $0x10] sm:$0xff] %v174
    %179 = vst [vmem:[#allocation3 + $0x18] sm:$0xff] %v175
    // Predicated region
    $region14: #{_dice_sums.1} parent=1 // pred_check
      %p180 = pneg %p73
    $region15: #{_dice_sums.1} parent=1 // pred_check_branch
      %182 = sbr.rel (%p180) target = $region17
    $region16: #{_dice_sums.1} parent=1 // pred_region
      %v183 = vld [vmem:[#allocation2] sm:$0xff]
      %v184 = vld [vmem:[#allocation2 + $0x8] sm:$0xff]
      %v185 = vld [vmem:[#allocation2 + $0x10] sm:$0xff]
      %v186 = vld [vmem:[#allocation2 + $0x18] sm:$0xff]
      %v187 = vadd.f32 %v183, %v184
      %v188 = vadd.f32 %v187, %v185
      %v189 = vadd.f32 %v188, %v186
      %190 = vadd.xlane.f32.xlu0 %v189
      %v191 = vpop.xlane.xlu0 %190
      %v192 = vrot.slane %v191, 4
      %v193 = vadd.f32 %v191, %v192
      %v194 = vrot.slane %v193, 2
      %v195 = vadd.f32 %v193, %v194
      %v196 = vrot.slane %v195, 1
      %v197 = vadd.f32 %v195, %v196
      %s198 = vtos %v197
      %s199 = scalar_lea.smem [#allocation4], 0
      %200 = sst [smem:[%s199]] %s198
      %v201 = vld [vmem:[#allocation3] sm:$0xff]
      %v202 = vld [vmem:[#allocation3 + $0x8] sm:$0xff]
      %v203 = vld [vmem:[#allocation3 + $0x10] sm:$0xff]
      %v204 = vld [vmem:[#allocation3 + $0x18] sm:$0xff]
      %v205 = vadd.f32 %v201, %v202
      %v206 = vadd.f32 %v205, %v203
      %v207 = vadd.f32 %v206, %v204
      %208 = vadd.xlane.f32.xlu0 %v207
      %v209 = vpop.xlane.xlu0 %208
      %v210 = vrot.slane %v209, 4
      %v211 = vadd.f32 %v209, %v210
      %v212 = vrot.slane %v211, 2
      %v213 = vadd.f32 %v211, %v212
      %v214 = vrot.slane %v213, 1
      %v215 = vadd.f32 %v213, %v214
      %s216 = vtos %v215
      %s217 = scalar_lea.smem [#allocation4], 1
      %218 = sst [smem:[%s217]] %s216
    $region17: #{_dice_sums.1} parent=1 // pred_fallthru
      _
    // Predicated region
    $region18: #{_dice_sums.1} parent=1 // pred_check
      _
    $region19: #{_dice_sums.1} parent=1 // pred_check_branch
      %220 = sbr.rel (0) target = $region21
    $region20: #{_dice_sums.1} parent=1 // pred_region
      %s222 = ssub.s32 16, 16
      %223 = vsyncadd [#allocation5], %s222
      %s225 = sshll.u32 %s2, 4
      %s226 = int_to_ptr.vmem [resolvable:$true] %s225
      %228 = dma.smem_to_vmem [#allocation4], 16, %s226, [#allocation5]
    $region21: #{_dice_sums.1} parent=1 // pred_fallthru
      _
    // Predicated region
    $region22: #{_dice_sums.1} parent=1 // pred_check
      _
    $region23: #{_dice_sums.1} parent=1 // pred_check_branch
      %230 = sbr.rel (0) target = $region25
    $region24: #{_dice_sums.1} parent=1 // pred_region
      %231 = dma.done [#allocation5], 16
    $region25: #{_dice_sums.1} parent=1 // pred_fallthru
      _
    %232 = sfence
    %233 = vsyncpa [#allocation5], 1

</llo_original>
